<compile_context>
chip_gen: v7x
topology: tpu7x:2x2x1
jax: 0.10.0
libtpu: 0.0.40
codegen_flags: <defaults>
</compile_context>

<pallas_src>
import jax
import jax.numpy as jnp
from jax.experimental import pallas as pl
from jax.experimental.pallas import tpu as pltpu


def _round_up(x, m):
    return (x + m - 1) // m * m


def qnet_kernel(obs_ref, act_ref, w1o_ref, w1a_ref, w2_ref, rows_ref, b3_ref, o_ref):
    # Packed row operand: row 0 = b1, row 1 = b2, row 2 = w3 (lane-dense fc3 row).
    b1 = rows_ref[0:1, :]                                   # (1, H) f32
    b2 = rows_ref[1:2, :]                                   # (1, H) f32
    w3 = rows_ref[2:3, :]                                   # (1, H) f32

    obs = obs_ref[...].astype(jnp.bfloat16)
    act = act_ref[...].astype(jnp.bfloat16)

    # fc1: cat([obs, act]) @ W1 == obs @ W1[:obs_dim] + act @ W1[obs_dim:]
    h1 = jnp.dot(obs, w1o_ref[...], preferred_element_type=jnp.float32)
    h1 = h1 + jnp.dot(act, w1a_ref[...], preferred_element_type=jnp.float32)
    h1 = jnp.maximum(h1 + b1, 0.0)                          # (tm, H) f32

    # fc2: bf16 MXU matmul, f32 accumulation.
    h2 = jnp.dot(h1.astype(jnp.bfloat16), w2_ref[...],
                 preferred_element_type=jnp.float32)
    h2 = jnp.maximum(h2 + b2, 0.0)                          # (tm, H) f32

    # fc3 (out_features == 1): VPU multiply + lane reduce -> per-row scalar column.
    q_col = jnp.sum(h2 * w3, axis=-1, keepdims=True)        # (tm, 1)

    # Column -> lane-dense row without a relayout: diagonal select + sublane reduce.
    tm = q_col.shape[0]
    ii = jax.lax.broadcasted_iota(jnp.int32, (tm, tm), 0)
    jj = jax.lax.broadcasted_iota(jnp.int32, (tm, tm), 1)
    q_row = jnp.sum(jnp.where(ii == jj, q_col, 0.0), axis=0, keepdims=True)  # (1, tm)

    o_ref[0] = (q_row + b3_ref[0]).astype(o_ref.dtype)      # unmasked lane-dense store


def qnetwork_forward(obs, act, kernel_params, *, block_b=512):
    """obs: (B, obs_dim) f32, act: (B, act_dim) f32 -> (B, 1) f32."""
    w1o, w1a, w2, rows, b3 = kernel_params
    B, obs_dim = obs.shape
    _, act_dim = act.shape
    H = w2.shape[0]

    # Tile sizing: single block for small batches; for B >= 256 split into >= 2
    # parallel blocks so v7x's second TensorCore gets work (cheap on v5e/v6e too).
    if B < 256:
        tm = B
    else:
        tm = min(block_b, _round_up(pl.cdiv(B, 2), 8))
    grid_b = pl.cdiv(B, tm)

    row_spec = lambda n: pl.BlockSpec((tm, n), lambda i: (i, 0))
    const_spec = lambda shape: pl.BlockSpec(shape, lambda i: (0, 0))  # VMEM-resident weights

    out = pl.pallas_call(
        qnet_kernel,
        out_shape=jax.ShapeDtypeStruct((grid_b, 1, tm), jnp.float32),
        grid=(grid_b,),
        in_specs=[
            row_spec(obs_dim),                                   # obs tile (f32)
            row_spec(act_dim),                                   # act tile (f32)
            const_spec((obs_dim, H)),                            # w1_obs (bf16)
            const_spec((act_dim, H)),                            # w1_act (bf16)
            const_spec((H, H)),                                  # w2     (bf16)
            const_spec((8, H)),                                  # packed b1/b2/w3 rows (f32)
            pl.BlockSpec(memory_space=pltpu.MemorySpace.SMEM),   # b3 scalar
        ],
        out_specs=pl.BlockSpec((1, 1, tm), lambda i: (i, 0, 0)),
        compiler_params=pltpu.CompilerParams(
            dimension_semantics=("parallel",)),                  # megacore / v7x 2-TC friendly
    )(obs, act, w1o, w1a, w2, rows, b3)

    # Lane-dense (grid, 1, tm) -> (B, 1); trailing padded rows (if any) are dropped.
    return out.reshape(grid_b * tm)[:B].reshape(B, 1)


def init_params(key, obs_dim, act_dim, hidden=256):
    """Deterministic init mimicking PyTorch nn.Linear default (uniform +/- 1/sqrt(fan_in))."""
    in_dim = obs_dim + act_dim
    keys = jax.random.split(key, 6)

    def linear(kw, kb, fan_in, fan_out):
        bound = 1.0 / jnp.sqrt(jnp.float32(fan_in))
        w = jax.random.uniform(kw, (fan_in, fan_out), jnp.float32, -bound, bound)
        b = jax.random.uniform(kb, (fan_out,), jnp.float32, -bound, bound)
        return w, b

    w1, b1 = linear(keys[0], keys[1], in_dim, hidden)
    w2, b2 = linear(keys[2], keys[3], hidden, hidden)
    w3, b3 = linear(keys[4], keys[5], hidden, 1)
    return (w1, b1, w2, b2, w3, b3)


def pack_params_for_kernel(params, obs_dim):
    """One-time repack into kernel layout: split + bf16 matmul weights, packed f32 rows."""
    w1, b1, w2, b2, w3, b3 = params
    H = w1.shape[1]
    w1o = w1[:obs_dim].astype(jnp.bfloat16)      # (obs_dim, H) bf16
    w1a = w1[obs_dim:].astype(jnp.bfloat16)      # (act_dim, H) bf16
    w2b = w2.astype(jnp.bfloat16)                # (H, H)       bf16
    rows = jnp.zeros((8, H), jnp.float32)        # single (8, H) VMEM tile
    rows = rows.at[0].set(b1)                    # b1
    rows = rows.at[1].set(b2)                    # b2
    rows = rows.at[2].set(w3.reshape(-1))        # w3 as lane-dense row
    b3s = b3.reshape(1)                          # (1,) SMEM scalar
    return tuple(jax.device_put(p) for p in (w1o, w1a, w2b, rows, b3s))


def reference_forward(obs, act, params):
    w1, b1, w2, b2, w3, b3 = params
    x = jnp.concatenate([obs, act], axis=1)
    x = jax.nn.relu(x @ w1 + b1)
    x = jax.nn.relu(x @ w2 + b2)
    return x @ w3 + b3


if __name__ == "__main__":
    key = jax.random.PRNGKey(0)
    k_obs, k_act, k_params = jax.random.split(key, 3)

    batch = 8        # small batch
    obs_dim = 8      # env.single_observation_space.shape -> (8,)
    act_dim = 4      # env.single_action_space.shape -> (4,)

    obs = jax.random.normal(k_obs, (batch, obs_dim), jnp.float32)
    act = jax.random.normal(k_act, (batch, act_dim), jnp.float32)
    params = init_params(k_params, obs_dim, act_dim, hidden=256)
    kparams = pack_params_for_kernel(params, obs_dim)

    q = qnetwork_forward(obs, act, kparams)
    q = jax.block_until_ready(q)

    q_ref = reference_forward(obs, act, params)
    assert q.shape == (batch, 1)
    # Tolerance relaxed vs. the pure-f32 reference because matmul weights are bf16
    # (f32 accumulation); observed error is O(1e-3) at these magnitudes.
    assert jnp.allclose(q, q_ref, atol=2e-2, rtol=2e-2), "mismatch vs reference"

    print("KERNEL_OK")
</pallas_src>

<mosaic_0001>
module attributes {stable_mosaic.version = 11 : i64} {
  func.func @qnet_kernel(%arg0: i32, %arg1: memref<8x8xf32, #tpu.memory_space<vmem>>, %arg2: memref<8x4xf32, #tpu.memory_space<vmem>>, %arg3: memref<8x256xbf16, #tpu.memory_space<vmem>>, %arg4: memref<4x256xbf16, #tpu.memory_space<vmem>>, %arg5: memref<256x256xbf16, #tpu.memory_space<vmem>>, %arg6: memref<8x256xf32, #tpu.memory_space<vmem>>, %arg7: memref<1xf32, #tpu.memory_space<smem>>, %arg8: memref<1x1x8xf32, #tpu.memory_space<vmem>>) attributes {dimension_semantics = [#tpu.dimension_semantics<parallel>], iteration_bounds = array<i64: 1>, scalar_prefetch = 0 : i64, scratch_operands = 0 : i64, tpu.core_type = #tpu.core_type<tc>, window_params = [{transform_indices = @transform_0, window_bounds = array<i64: 8, 8>}, {transform_indices = @transform_1, window_bounds = array<i64: 8, 4>}, {pipeline_mode = #tpu.pipeline_mode<synchronous>, transform_indices = @transform_2, window_bounds = array<i64: 8, 256>}, {pipeline_mode = #tpu.pipeline_mode<synchronous>, transform_indices = @transform_3, window_bounds = array<i64: 4, 256>}, {pipeline_mode = #tpu.pipeline_mode<synchronous>, transform_indices = @transform_4, window_bounds = array<i64: 256, 256>}, {pipeline_mode = #tpu.pipeline_mode<synchronous>, transform_indices = @transform_5, window_bounds = array<i64: 8, 256>}, {transform_indices = @transform_6, window_bounds = array<i64: 1>}, {transform_indices = @transform_7, window_bounds = array<i64: 1, 1, 8>}]} {
    %c0 = arith.constant 0 : index
    %c0_0 = arith.constant 0 : index
    %0 = vector.load %arg6[%c0, %c0_0] : memref<8x256xf32, #tpu.memory_space<vmem>>, vector<1x256xf32>
    %c1 = arith.constant 1 : index
    %c0_1 = arith.constant 0 : index
    %1 = vector.load %arg6[%c1, %c0_1] : memref<8x256xf32, #tpu.memory_space<vmem>>, vector<1x256xf32>
    %c2 = arith.constant 2 : index
    %c0_2 = arith.constant 0 : index
    %2 = vector.load %arg6[%c2, %c0_2] : memref<8x256xf32, #tpu.memory_space<vmem>>, vector<1x256xf32>
    %c0_3 = arith.constant 0 : index
    %c0_4 = arith.constant 0 : index
    %3 = vector.load %arg1[%c0_3, %c0_4] : memref<8x8xf32, #tpu.memory_space<vmem>>, vector<8x8xf32>
    %4 = arith.truncf %3 : vector<8x8xf32> to vector<8x8xbf16>
    %c0_5 = arith.constant 0 : index
    %c0_6 = arith.constant 0 : index
    %5 = vector.load %arg2[%c0_5, %c0_6] : memref<8x4xf32, #tpu.memory_space<vmem>>, vector<8x4xf32>
    %6 = arith.truncf %5 : vector<8x4xf32> to vector<8x4xbf16>
    %c0_7 = arith.constant 0 : index
    %c0_8 = arith.constant 0 : index
    %7 = vector.load %arg3[%c0_7, %c0_8] : memref<8x256xbf16, #tpu.memory_space<vmem>>, vector<8x256xbf16>
    %cst = arith.constant dense<0.000000e+00> : vector<8x256xf32>
    %8 = tpu.matmul %4, %7, %cst {dimension_numbers = #tpu.dot_dimension_numbers<[1], [0], [0], [1], [0, 0, 1, 1], [], []>} : vector<8x8xbf16>, vector<8x256xbf16>, vector<8x256xf32> -> vector<8x256xf32>
    %c0_9 = arith.constant 0 : index
    %c0_10 = arith.constant 0 : index
    %9 = vector.load %arg4[%c0_9, %c0_10] : memref<4x256xbf16, #tpu.memory_space<vmem>>, vector<4x256xbf16>
    %cst_11 = arith.constant dense<0.000000e+00> : vector<8x256xf32>
    %10 = tpu.matmul %6, %9, %cst_11 {dimension_numbers = #tpu.dot_dimension_numbers<[1], [0], [0], [1], [0, 0, 1, 1], [], []>} : vector<8x4xbf16>, vector<4x256xbf16>, vector<8x256xf32> -> vector<8x256xf32>
    %11 = arith.addf %8, %10 : vector<8x256xf32>
    %12 = vector.broadcast %0 : vector<1x256xf32> to vector<8x256xf32>
    %13 = arith.addf %11, %12 : vector<8x256xf32>
    %cst_12 = arith.constant 0.000000e+00 : f32
    %14 = vector.broadcast %cst_12 : f32 to vector<8x256xf32>
    %15 = arith.maximumf %13, %14 : vector<8x256xf32>
    %16 = arith.truncf %15 : vector<8x256xf32> to vector<8x256xbf16>
    %c0_13 = arith.constant 0 : index
    %c0_14 = arith.constant 0 : index
    %17 = vector.load %arg5[%c0_13, %c0_14] : memref<256x256xbf16, #tpu.memory_space<vmem>>, vector<256x256xbf16>
    %cst_15 = arith.constant dense<0.000000e+00> : vector<8x256xf32>
    %18 = tpu.matmul %16, %17, %cst_15 {dimension_numbers = #tpu.dot_dimension_numbers<[1], [0], [0], [1], [0, 0, 1, 1], [], []>} : vector<8x256xbf16>, vector<256x256xbf16>, vector<8x256xf32> -> vector<8x256xf32>
    %19 = vector.broadcast %1 : vector<1x256xf32> to vector<8x256xf32>
    %20 = arith.addf %18, %19 : vector<8x256xf32>
    %cst_16 = arith.constant 0.000000e+00 : f32
    %21 = vector.broadcast %cst_16 : f32 to vector<8x256xf32>
    %22 = arith.maximumf %20, %21 : vector<8x256xf32>
    %23 = vector.broadcast %2 : vector<1x256xf32> to vector<8x256xf32>
    %24 = arith.mulf %22, %23 : vector<8x256xf32>
    %cst_17 = arith.constant dense<0.000000e+00> : vector<8xf32>
    %25 = vector.multi_reduction <add>, %24, %cst_17 [1] : vector<8x256xf32> to vector<8xf32>
    %26 = vector.shape_cast %25 : vector<8xf32> to vector<8x1xf32>
    %27 = tpu.iota {dimensions = array<i32: 0>} : vector<8x8xi32>
    %28 = tpu.iota {dimensions = array<i32: 1>} : vector<8x8xi32>
    %29 = arith.cmpi eq, %27, %28 : vector<8x8xi32>
    %cst_18 = arith.constant 0.000000e+00 : f32
    %30 = vector.shape_cast %26 : vector<8x1xf32> to vector<8x1xf32>
    %31 = vector.broadcast %30 : vector<8x1xf32> to vector<8x8xf32>
    %32 = vector.broadcast %cst_18 : f32 to vector<8x8xf32>
    %33 = arith.select %29, %31, %32 : vector<8x8xi1>, vector<8x8xf32>
    %cst_19 = arith.constant dense<0.000000e+00> : vector<8xf32>
    %34 = vector.multi_reduction <add>, %33, %cst_19 [0] : vector<8x8xf32> to vector<8xf32>
    %35 = vector.shape_cast %34 : vector<8xf32> to vector<1x8xf32>
    %c0_20 = arith.constant 0 : index
    %36 = memref.load %arg7[%c0_20] : memref<1xf32, #tpu.memory_space<smem>>
    %37 = vector.broadcast %36 : f32 to vector<1x8xf32>
    %38 = arith.addf %35, %37 : vector<1x8xf32>
    %c0_21 = arith.constant 0 : index
    %c0_22 = arith.constant 0 : index
    %c0_23 = arith.constant 0 : index
    %39 = vector.load %arg8[%c0_21, %c0_22, %c0_23] : memref<1x1x8xf32, #tpu.memory_space<vmem>>, vector<1x1x8xf32>
    %40 = vector.shape_cast %39 : vector<1x1x8xf32> to vector<1x8xf32>
    %41 = vector.shape_cast %38 : vector<1x8xf32> to vector<1x1x8xf32>
    tpu.vector_store %arg8[%c0_21, %c0_22, %c0_23], %41 {strides = array<i32>} : memref<1x1x8xf32, #tpu.memory_space<vmem>>, vector<1x1x8xf32>,
    return
  }
  func.func @transform_0(%arg0: i32) -> (i32, i32) {
    %c0_i32 = arith.constant 0 : i32
    %c0_i32_0 = arith.constant 0 : i32
    return %arg0, %c0_i32 : i32, i32
  }
  func.func @transform_1(%arg0: i32) -> (i32, i32) {
    %c0_i32 = arith.constant 0 : i32
    %c0_i32_0 = arith.constant 0 : i32
    return %arg0, %c0_i32 : i32, i32
  }
  func.func @transform_2(%arg0: i32) -> (i32, i32) {
    %c0_i32 = arith.constant 0 : i32
    %c0_i32_0 = arith.constant 0 : i32
    %c0_i32_1 = arith.constant 0 : i32
    return %c0_i32, %c0_i32_0 : i32, i32
  }
  func.func @transform_3(%arg0: i32) -> (i32, i32) {
    %c0_i32 = arith.constant 0 : i32
    %c0_i32_0 = arith.constant 0 : i32
    %c0_i32_1 = arith.constant 0 : i32
    return %c0_i32, %c0_i32_0 : i32, i32
  }
  func.func @transform_4(%arg0: i32) -> (i32, i32) {
    %c0_i32 = arith.constant 0 : i32
    %c0_i32_0 = arith.constant 0 : i32
    %c0_i32_1 = arith.constant 0 : i32
    return %c0_i32, %c0_i32_0 : i32, i32
  }
  func.func @transform_5(%arg0: i32) -> (i32, i32) {
    %c0_i32 = arith.constant 0 : i32
    %c0_i32_0 = arith.constant 0 : i32
    %c0_i32_1 = arith.constant 0 : i32
    return %c0_i32, %c0_i32_0 : i32, i32
  }
  func.func @transform_6(%arg0: i32) -> i32 {
    %c0_i32 = arith.constant 0 : i32
    %c0_i32_0 = arith.constant 0 : i32
    return %c0_i32 : i32
  }
  func.func @transform_7(%arg0: i32) -> (i32, i32, i32) {
    %c0_i32 = arith.constant 0 : i32
    %c0_i32_0 = arith.constant 0 : i32
    %c0_i32_1 = arith.constant 0 : i32
    return %arg0, %c0_i32, %c0_i32_0 : i32, i32, i32
  }
}

</mosaic_0001>

<llo_original>
// kernel: tpu_custom_call.1
$region0: #{tpu_custom_call.1}
  #allocation0 [shape = 'u32[]', space=smem, size = 0x4, offset = 0x4, fixed_abs, tag = 'smem constant byte address 0x4 - core index']
  #allocation1 [shape = 'u32[144,128]{1,0:T(1,128)}', space=vmem, size = 0x12000, scoped, tag = 'internal scratch']
  #allocation2 [shape = 'f32[1]{0:T(128)S(6)}', space=smem, size = 0x200, scoped, tag = 'scoped memory for tpu_custom_call.1']
  %s0 = inlined_call_operand.vmem [shape: f32[8,8], index: 0, kind: input, shape index: {}]
  %s1 = inlined_call_operand.vmem [shape: f32[8,4], index: 1, kind: input, shape index: {}]
  %s2 = inlined_call_operand.hbm [shape: bf16[8,256], index: 2, kind: input, shape index: {}]
  %s3 = inlined_call_operand.vmem [shape: bf16[4,256], index: 3, kind: input, shape index: {}]
  %s4 = inlined_call_operand.hbm [shape: bf16[256,256], index: 4, kind: input, shape index: {}]
  %s5 = inlined_call_operand.vmem [shape: f32[8,256], index: 5, kind: input, shape index: {}]
  %s6 = inlined_call_operand.<no memory space> [shape: f32[1], index: 6, kind: input, shape index: {}]
  %s7 = inlined_call_operand.hbm [shape: f32[1,1,8], index: 7, kind: output, shape index: {}]
  %s8 = sld [smem:[#allocation0]]
  $region46: #{tpu_custom_call.1} parent=0
    _
  %s10 = ssub.s32 1, %s8
  %s11 = scalar_select 0, %s10, %s8
  %12 = sst [smem:[#allocation2]] %s6
  $region1: #{tpu_custom_call.1} parent=0
    #allocation3 [shape = 'u8[4096]{0}', space=vmem, size = 0x1000, scoped, tag = 'input window, operand 2, single buffered']
    #allocation4 [shape = 's32[1]{0}', space=sflag, size = 0x4, scoped, tag = 'scoped memory for tpu_custom_call.1']
    #allocation5 [shape = 's32[1]{0}', space=sflag, size = 0x4, scoped, tag = 'scoped memory for tpu_custom_call.1']
    #allocation6 [shape = 'u8[131072]{0}', space=vmem, size = 0x20000, scoped, tag = 'input window, operand 4, single buffered']
    #allocation7 [shape = 's32[1]{0}', space=sflag, size = 0x4, scoped, tag = 'scoped memory for tpu_custom_call.1']
    #allocation8 [shape = 'u8[512]{0}', space=vmem, size = 0x400, scoped, tag = 'output window, operand 0, single buffered']
    %13 = vsyncpa [#allocation4], 0
    %14 = vsyncpa [#allocation7], 0
    %15 = vsyncpa [#allocation5], 0
    // Predicated region
    $region2: #{tpu_custom_call.1} parent=1 // pred_check
      _
    $region3: #{tpu_custom_call.1} parent=1 // pred_check_branch
      %17 = sbr.rel (0) target = $region5
    $region4: #{tpu_custom_call.1} parent=1 // pred_region
      _
    $region5: #{tpu_custom_call.1} parent=1 // pred_fallthru
      _
    // Predicated region
    $region6: #{tpu_custom_call.1} parent=1 // pred_check
      _
    $region7: #{tpu_custom_call.1} parent=1 // pred_check_branch
      %19 = sbr.rel (0) target = $region9
    $region8: #{tpu_custom_call.1} parent=1 // pred_region
      _
    $region9: #{tpu_custom_call.1} parent=1 // pred_fallthru
      _
    // Predicated region
    $region10: #{tpu_custom_call.1} parent=1 // pred_check
      _
    $region11: #{tpu_custom_call.1} parent=1 // pred_check_branch
      %21 = sbr.rel (0) target = $region13
    $region12: #{tpu_custom_call.1} parent=1 // pred_region
      %s23 = ssub.s32 128, 128
      %24 = vsyncadd [#allocation4], %s23
      %s26 = sshll.u32 [#allocation3], 4
      %s27 = int_to_ptr.vmem [resolvable:$true] %s26
      %29 = dma.hbm_to_vmem [thread:$0]  %s2, 128, %s27, [#allocation4]
    $region13: #{tpu_custom_call.1} parent=1 // pred_fallthru
      _
    // Predicated region
    $region14: #{tpu_custom_call.1} parent=1 // pred_check
      _
    $region15: #{tpu_custom_call.1} parent=1 // pred_check_branch
      %31 = sbr.rel (0) target = $region17
    $region16: #{tpu_custom_call.1} parent=1 // pred_region
      _
    $region17: #{tpu_custom_call.1} parent=1 // pred_fallthru
      _
    // Predicated region
    $region18: #{tpu_custom_call.1} parent=1 // pred_check
      _
    $region19: #{tpu_custom_call.1} parent=1 // pred_check_branch
      %33 = sbr.rel (0) target = $region21
    $region20: #{tpu_custom_call.1} parent=1 // pred_region
      %s35 = ssub.s32 4096, 4096
      %36 = vsyncadd [#allocation7], %s35
      %s37 = sshll.u32 [#allocation6], 4
      %s38 = int_to_ptr.vmem [resolvable:$true] %s37
      %43 = dma.hbm_to_vmem [thread:$0]  %s4, 4096, %s38, [#allocation7], 128, 128, 8
    $region21: #{tpu_custom_call.1} parent=1 // pred_fallthru
      _
    // Predicated region
    $region22: #{tpu_custom_call.1} parent=1 // pred_check
      _
    $region23: #{tpu_custom_call.1} parent=1 // pred_check_branch
      %45 = sbr.rel (0) target = $region25
    $region24: #{tpu_custom_call.1} parent=1 // pred_region
      _
    $region25: #{tpu_custom_call.1} parent=1 // pred_fallthru
      _
    // Predicated region
    $region26: #{tpu_custom_call.1} parent=1 // pred_check
      _
    $region27: #{tpu_custom_call.1} parent=1 // pred_check_branch
      %47 = sbr.rel (0) target = $region29
    $region28: #{tpu_custom_call.1} parent=1 // pred_region
      _
    $region29: #{tpu_custom_call.1} parent=1 // pred_fallthru
      _
    // Predicated region
    $region30: #{tpu_custom_call.1} parent=1 // pred_check
      _
    $region31: #{tpu_custom_call.1} parent=1 // pred_check_branch
      %49 = sbr.rel (0) target = $region33
    $region32: #{tpu_custom_call.1} parent=1 // pred_region
      %50 = dma.done [#allocation4], 128
    $region33: #{tpu_custom_call.1} parent=1 // pred_fallthru
      _
    // Predicated region
    $region34: #{tpu_custom_call.1} parent=1 // pred_check
      _
    $region35: #{tpu_custom_call.1} parent=1 // pred_check_branch
      %52 = sbr.rel (0) target = $region37
    $region36: #{tpu_custom_call.1} parent=1 // pred_region
      %53 = dma.done [#allocation7], 4096
    $region37: #{tpu_custom_call.1} parent=1 // pred_fallthru
      _
    %v55 = vld [vmem:[%s5] ss:$8 sm:$0x3]
    %s56 = scalar_lea.vmem %s5, 1
    %v57 = vld [vmem:[%s56] ss:$8 sm:$0x3]
    %s58 = scalar_lea.vmem %s5, 2
    %v59 = vld [vmem:[%s58] ss:$8 sm:$0x3]
    %v60 = vld [vmem:[%s0] sm:$0xff]
    %v61 = vpack.c.bf16 %v60, %v60
    %v62 = vld [vmem:[%s1] sm:$0xff]
    %v63 = vpack.c.bf16 %v62, %v62
    %v64 = vld [vmem:[#allocation3] sm:$0xff]
    %v65 = vld [vmem:[%s3] sm:$0xf]
    %v68 = vunpack.c.l.s4 1983009808
    %v69 = vunpack.c.0.s8 %v68
    %v70 = vlaneseq
    %v71 = vshrl.u32 %v70, 7
    %v72 = vsub.s32 %v69, %v71
    %v73 = vrot.slane %v65, %v72
    %v74 = vcombine.high %v73, %v73
    %vm75 = vcmask 31744
    %v77 = vsel %vm75, %v63, 0
    %vm79 = vcmask 1041408
    %v81 = vsel %vm79, %v73, 0
    %v84 = vsel %vm79, %v74, 0
    %86 = vmatprep.subr.bf16.mxu0 %v84
    %87 = vmatpush1.bf16.msra.mxu0 %v81
    %88 = vmatprep.subr.bf16.mxu0 0
    %89 = vmatpush1.bf16.msra.mxu0 0
    %90 = vmatprep.subr.bf16.mxu0 0
    %91 = vmatpush1.bf16.msra.mxu0 0
    %92 = vmatprep.subr.bf16.mxu0 0
    %93 = vmatpush1.bf16.msra.mxu0 0
    %94 = vmatprep.subr.bf16.mxu0 0
    %95 = vmatpush1.bf16.msra.mxu0 0
    %96 = vmatprep.subr.bf16.mxu0 0
    %97 = vmatpush1.bf16.msra.mxu0 0
    %98 = vmatprep.subr.bf16.mxu0 0
    %99 = vmatpush1.bf16.msra.mxu0 0
    %100 = vmatprep.subr.bf16.mxu0 0
    %101 = vmatpush1.bf16.msra.mxu0 0
    %102 = vmatprep.subr.bf16.mxu0 0
    %103 = vmatpush1.bf16.msra.mxu0 0
    %104 = vmatprep.subr.bf16.mxu0 0
    %105 = vmatpush1.bf16.msra.mxu0 0
    %106 = vmatprep.subr.bf16.mxu0 0
    %107 = vmatpush1.bf16.msra.mxu0 0
    %108 = vmatprep.subr.bf16.mxu0 0
    %109 = vmatpush1.bf16.msra.mxu0 0
    %110 = vmatprep.subr.bf16.mxu0 0
    %111 = vmatpush1.bf16.msra.mxu0 0
    %112 = vmatprep.subr.bf16.mxu0 0
    %113 = vmatpush1.bf16.msra.mxu0 0
    %114 = vmatprep.subr.bf16.mxu0 0
    %115 = vmatpush1.bf16.msra.mxu0 0
    %116 = vmatprep.subr.bf16.mxu0 0
    %117 = vmatpush1.bf16.msra.mxu0 0
    %118 = vmatprep.mubr.bf16.mxu0 0
    %119 = vmatmul.mubr.bf16.gmra.mrb[0].mxu0 %v77
    %v120 = vpop.f32.mrb[0].mxu0
    %v121 = vadd.f32 0.0, %v120
    %v122 = vpop.f32.mrb[0].mxu0
    %v123 = vadd.f32 0.0, %v122
    %v124 = vpop.f32.mrb[0].mxu0
    %v125 = vpop.f32.mrb[0].mxu0
    %126 = vdwg.mxu0
    %v128 = vunpack.c.l.b16 %v64
    %v129 = vunpack.c.h.b16 %v64
    %v130 = vpack.c.b16 %v128, %v128
    %v131 = vpack.c.b16 %v129, %v129
    %vm132 = vcmask 64512
    %v134 = vsel %vm132, %v61, 0
    %vm136 = vcmask 1043456
    %v138 = vsel %vm136, %v130, 0
    %v141 = vsel %vm136, %v131, 0
    %143 = vmatprep.subr.bf16.mxu0 %v141
    %144 = vmatpush1.bf16.msra.mxu0 %v138
    %145 = vmatprep.subr.bf16.mxu0 0
    %146 = vmatpush1.bf16.msra.mxu0 0
    %147 = vmatprep.subr.bf16.mxu0 0
    %148 = vmatpush1.bf16.msra.mxu0 0
    %149 = vmatprep.subr.bf16.mxu0 0
    %150 = vmatpush1.bf16.msra.mxu0 0
    %151 = vmatprep.subr.bf16.mxu0 0
    %152 = vmatpush1.bf16.msra.mxu0 0
    %153 = vmatprep.subr.bf16.mxu0 0
    %154 = vmatpush1.bf16.msra.mxu0 0
    %155 = vmatprep.subr.bf16.mxu0 0
    %156 = vmatpush1.bf16.msra.mxu0 0
    %157 = vmatprep.subr.bf16.mxu0 0
    %158 = vmatpush1.bf16.msra.mxu0 0
    %159 = vmatprep.subr.bf16.mxu0 0
    %160 = vmatpush1.bf16.msra.mxu0 0
    %161 = vmatprep.subr.bf16.mxu0 0
    %162 = vmatpush1.bf16.msra.mxu0 0
    %163 = vmatprep.subr.bf16.mxu0 0
    %164 = vmatpush1.bf16.msra.mxu0 0
    %165 = vmatprep.subr.bf16.mxu0 0
    %166 = vmatpush1.bf16.msra.mxu0 0
    %167 = vmatprep.subr.bf16.mxu0 0
    %168 = vmatpush1.bf16.msra.mxu0 0
    %169 = vmatprep.subr.bf16.mxu0 0
    %170 = vmatpush1.bf16.msra.mxu0 0
    %171 = vmatprep.subr.bf16.mxu0 0
    %172 = vmatpush1.bf16.msra.mxu0 0
    %173 = vmatprep.subr.bf16.mxu0 0
    %174 = vmatpush1.bf16.msra.mxu0 0
    %175 = vmatprep.mubr.bf16.mxu0 0
    %176 = vmatmul.mubr.bf16.gmra.mrb[0].mxu0 %v134
    %v177 = vpop.f32.mrb[0].mxu0
    %v178 = vadd.f32 %v121, %v177
    %v179 = vpop.f32.mrb[0].mxu0
    %v180 = vadd.f32 %v123, %v179
    %v181 = vpop.f32.mrb[0].mxu0
    %v182 = vpop.f32.mrb[0].mxu0
    %183 = vdwg.mxu0
    %v185 = vlaneseq
    %v186 = vshrl.u32 %v185, 7
    %v187 = vsub.s32 0, %v186
    %v188 = vrot.slane %v55, %v187
    %v189 = vlaneseq
    %v190 = vshrl.u32 %v189, 7
    %v191 = vsub.s32 1, %v190
    %v192 = vrot.slane %v55, %v191
    %v195 = vadd.f32 %v178, %v188
    %v196 = vadd.f32 %v180, %v192
    %v197 = vmax.f32 %v195, 0.0
    %v198 = vmax.f32 %v196, 0.0
    %v199 = vpack.c.bf16 %v197, %v197
    %v200 = vpack.c.bf16 %v198, %v198
    %v201 = vld [vmem:[#allocation6] sm:$0xff]
    %v202 = vld [vmem:[#allocation6 + $0x8] sm:$0xff]
    %v203 = vld [vmem:[#allocation6 + $0x10] sm:$0xff]
    %v204 = vld [vmem:[#allocation6 + $0x18] sm:$0xff]
    %v205 = vld [vmem:[#allocation6 + $0x20] sm:$0xff]
    %v206 = vld [vmem:[#allocation6 + $0x28] sm:$0xff]
    %v207 = vld [vmem:[#allocation6 + $0x30] sm:$0xff]
    %v208 = vld [vmem:[#allocation6 + $0x38] sm:$0xff]
    %v209 = vld [vmem:[#allocation6 + $0x40] sm:$0xff]
    %v210 = vld [vmem:[#allocation6 + $0x48] sm:$0xff]
    %v211 = vld [vmem:[#allocation6 + $0x50] sm:$0xff]
    %v212 = vld [vmem:[#allocation6 + $0x58] sm:$0xff]
    %v213 = vld [vmem:[#allocation6 + $0x60] sm:$0xff]
    %v214 = vld [vmem:[#allocation6 + $0x68] sm:$0xff]
    %v215 = vld [vmem:[#allocation6 + $0x70] sm:$0xff]
    %v216 = vld [vmem:[#allocation6 + $0x78] sm:$0xff]
    %v217 = vld [vmem:[#allocation6 + $0x80] sm:$0xff]
    %v218 = vld [vmem:[#allocation6 + $0x88] sm:$0xff]
    %v219 = vld [vmem:[#allocation6 + $0x90] sm:$0xff]
    %v220 = vld [vmem:[#allocation6 + $0x98] sm:$0xff]
    %v221 = vld [vmem:[#allocation6 + $0xa0] sm:$0xff]
    %v222 = vld [vmem:[#allocation6 + $0xa8] sm:$0xff]
    %v223 = vld [vmem:[#allocation6 + $0xb0] sm:$0xff]
    %v224 = vld [vmem:[#allocation6 + $0xb8] sm:$0xff]
    %v225 = vld [vmem:[#allocation6 + $0xc0] sm:$0xff]
    %v226 = vld [vmem:[#allocation6 + $0xc8] sm:$0xff]
    %v227 = vld [vmem:[#allocation6 + $0xd0] sm:$0xff]
    %v228 = vld [vmem:[#allocation6 + $0xd8] sm:$0xff]
    %v229 = vld [vmem:[#allocation6 + $0xe0] sm:$0xff]
    %v230 = vld [vmem:[#allocation6 + $0xe8] sm:$0xff]
    %v231 = vld [vmem:[#allocation6 + $0xf0] sm:$0xff]
    %v232 = vld [vmem:[#allocation6 + $0xf8] sm:$0xff]
    %v234 = vlaneseq
    %v235 = vshrl.u32 %v234, 7
    %v236 = vsub.s32 0, %v235
    %v237 = vrot.slane %v57, %v236
    %v238 = vlaneseq
    %v239 = vshrl.u32 %v238, 7
    %v240 = vsub.s32 1, %v239
    %v241 = vrot.slane %v57, %v240
    %v276 = vunpack.c.l.b16 %v201
    %v277 = vunpack.c.h.b16 %v201
    %v278 = vunpack.c.l.b16 %v202
    %v279 = vunpack.c.h.b16 %v202
    %v280 = vunpack.c.l.b16 %v203
    %v281 = vunpack.c.h.b16 %v203
    %v282 = vunpack.c.l.b16 %v204
    %v283 = vunpack.c.h.b16 %v204
    %v284 = vunpack.c.l.b16 %v205
    %v285 = vunpack.c.h.b16 %v205
    %v286 = vunpack.c.l.b16 %v206
    %v287 = vunpack.c.h.b16 %v206
    %v288 = vunpack.c.l.b16 %v207
    %v289 = vunpack.c.h.b16 %v207
    %v290 = vunpack.c.l.b16 %v208
    %v291 = vunpack.c.h.b16 %v208
    %v292 = vunpack.c.l.b16 %v209
    %v293 = vunpack.c.h.b16 %v209
    %v294 = vunpack.c.l.b16 %v210
    %v295 = vunpack.c.h.b16 %v210
    %v296 = vunpack.c.l.b16 %v211
    %v297 = vunpack.c.h.b16 %v211
    %v298 = vunpack.c.l.b16 %v212
    %v299 = vunpack.c.h.b16 %v212
    %v300 = vunpack.c.l.b16 %v213
    %v301 = vunpack.c.h.b16 %v213
    %v302 = vunpack.c.l.b16 %v214
    %v303 = vunpack.c.h.b16 %v214
    %v304 = vunpack.c.l.b16 %v215
    %v305 = vunpack.c.h.b16 %v215
    %v306 = vunpack.c.l.b16 %v216
    %v307 = vunpack.c.h.b16 %v216
    %v308 = vunpack.c.l.b16 %v217
    %v309 = vunpack.c.h.b16 %v217
    %v310 = vunpack.c.l.b16 %v218
    %v311 = vunpack.c.h.b16 %v218
    %v312 = vunpack.c.l.b16 %v219
    %v313 = vunpack.c.h.b16 %v219
    %v314 = vunpack.c.l.b16 %v220
    %v315 = vunpack.c.h.b16 %v220
    %v316 = vunpack.c.l.b16 %v221
    %v317 = vunpack.c.h.b16 %v221
    %v318 = vunpack.c.l.b16 %v222
    %v319 = vunpack.c.h.b16 %v222
    %v320 = vunpack.c.l.b16 %v223
    %v321 = vunpack.c.h.b16 %v223
    %v322 = vunpack.c.l.b16 %v224
    %v323 = vunpack.c.h.b16 %v224
    %v324 = vunpack.c.l.b16 %v225
    %v325 = vunpack.c.h.b16 %v225
    %v326 = vunpack.c.l.b16 %v226
    %v327 = vunpack.c.h.b16 %v226
    %v328 = vunpack.c.l.b16 %v227
    %v329 = vunpack.c.h.b16 %v227
    %v330 = vunpack.c.l.b16 %v228
    %v331 = vunpack.c.h.b16 %v228
    %v332 = vunpack.c.l.b16 %v229
    %v333 = vunpack.c.h.b16 %v229
    %v334 = vunpack.c.l.b16 %v230
    %v335 = vunpack.c.h.b16 %v230
    %v336 = vunpack.c.l.b16 %v231
    %v337 = vunpack.c.h.b16 %v231
    %v338 = vunpack.c.l.b16 %v232
    %v339 = vunpack.c.h.b16 %v232
    %v340 = vpack.c.b16 %v278, %v276
    %v341 = vpack.c.b16 %v279, %v277
    %v342 = vpack.c.b16 %v282, %v280
    %v343 = vpack.c.b16 %v283, %v281
    %v344 = vpack.c.b16 %v286, %v284
    %v345 = vpack.c.b16 %v287, %v285
    %v346 = vpack.c.b16 %v290, %v288
    %v347 = vpack.c.b16 %v291, %v289
    %v348 = vpack.c.b16 %v294, %v292
    %v349 = vpack.c.b16 %v295, %v293
    %v350 = vpack.c.b16 %v298, %v296
    %v351 = vpack.c.b16 %v299, %v297
    %v352 = vpack.c.b16 %v302, %v300
    %v353 = vpack.c.b16 %v303, %v301
    %v354 = vpack.c.b16 %v306, %v304
    %v355 = vpack.c.b16 %v307, %v305
    %v356 = vpack.c.b16 %v310, %v308
    %v357 = vpack.c.b16 %v311, %v309
    %v358 = vpack.c.b16 %v314, %v312
    %v359 = vpack.c.b16 %v315, %v313
    %v360 = vpack.c.b16 %v318, %v316
    %v361 = vpack.c.b16 %v319, %v317
    %v362 = vpack.c.b16 %v322, %v320
    %v363 = vpack.c.b16 %v323, %v321
    %v364 = vpack.c.b16 %v326, %v324
    %v365 = vpack.c.b16 %v327, %v325
    %v366 = vpack.c.b16 %v330, %v328
    %v367 = vpack.c.b16 %v331, %v329
    %v368 = vpack.c.b16 %v334, %v332
    %v369 = vpack.c.b16 %v335, %v333
    %v370 = vpack.c.b16 %v338, %v336
    %v371 = vpack.c.b16 %v339, %v337
    %404 = vmatprep.subr.bf16.mxu0 %v341
    %405 = vmatpush1.bf16.msra.mxu0 %v340
    %406 = vmatprep.subr.bf16.mxu0 %v343
    %407 = vmatpush1.bf16.msra.mxu0 %v342
    %408 = vmatprep.subr.bf16.mxu0 %v345
    %409 = vmatpush1.bf16.msra.mxu0 %v344
    %410 = vmatprep.subr.bf16.mxu0 %v347
    %411 = vmatpush1.bf16.msra.mxu0 %v346
    %412 = vmatprep.subr.bf16.mxu0 %v349
    %413 = vmatpush1.bf16.msra.mxu0 %v348
    %414 = vmatprep.subr.bf16.mxu0 %v351
    %415 = vmatpush1.bf16.msra.mxu0 %v350
    %416 = vmatprep.subr.bf16.mxu0 %v353
    %417 = vmatpush1.bf16.msra.mxu0 %v352
    %418 = vmatprep.subr.bf16.mxu0 %v355
    %419 = vmatpush1.bf16.msra.mxu0 %v354
    %420 = vmatprep.subr.bf16.mxu0 %v357
    %421 = vmatpush1.bf16.msra.mxu0 %v356
    %422 = vmatprep.subr.bf16.mxu0 %v359
    %423 = vmatpush1.bf16.msra.mxu0 %v358
    %424 = vmatprep.subr.bf16.mxu0 %v361
    %425 = vmatpush1.bf16.msra.mxu0 %v360
    %426 = vmatprep.subr.bf16.mxu0 %v363
    %427 = vmatpush1.bf16.msra.mxu0 %v362
    %428 = vmatprep.subr.bf16.mxu0 %v365
    %429 = vmatpush1.bf16.msra.mxu0 %v364
    %430 = vmatprep.subr.bf16.mxu0 %v367
    %431 = vmatpush1.bf16.msra.mxu0 %v366
    %432 = vmatprep.subr.bf16.mxu0 %v369
    %433 = vmatpush1.bf16.msra.mxu0 %v368
    %434 = vmatprep.subr.bf16.mxu0 %v371
    %435 = vmatpush1.bf16.msra.mxu0 %v370
    %436 = vmatprep.mubr.bf16.mxu0 %v200
    %437 = vmatmul.mubr.bf16.gmra.mrb[0].mxu0 %v199
    %v438 = vpop.f32.mrb[0].mxu0
    %v439 = vadd.f32 %v237, %v438
    %v440 = vpop.f32.mrb[0].mxu0
    %v441 = vadd.f32 %v241, %v440
    %v442 = vpop.f32.mrb[0].mxu0
    %v443 = vpop.f32.mrb[0].mxu0
    %444 = vdwg.mxu0
    %v445 = vmax.f32 %v439, 0.0
    %v446 = vmax.f32 %v441, 0.0
    %v448 = vlaneseq
    %v449 = vshrl.u32 %v448, 7
    %v450 = vsub.s32 0, %v449
    %v451 = vrot.slane %v59, %v450
    %v452 = vlaneseq
    %v453 = vshrl.u32 %v452, 7
    %v454 = vsub.s32 1, %v453
    %v455 = vrot.slane %v59, %v454
    %v458 = vmul.f32 %v445, %v451
    %v459 = vmul.f32 %v446, %v455
    %v460 = vadd.f32 %v458, %v459
    %461 = vadd.xlane.f32.xlu0 %v460
    %v462 = vpop.xlane.xlu0 %461
    %v463 = vlaneseq
    %v464 = vshrl.u32 %v463, 7
    %v465 = vlaneseq
    %v466 = vand.u32 %v465, 127
    %vm467 = vcmp.eq.s32.totalorder %v464, %v466
    %v468 = vsel %vm467, %v462, 0.0
    %v469 = vsel %vm132, %v468, 0.0
    %v470 = vrot.slane %v469, 4
    %v471 = vadd.f32 %v469, %v470
    %v472 = vrot.slane %v471, 2
    %v473 = vadd.f32 %v471, %v472
    %v474 = vrot.slane %v473, 1
    %v475 = vadd.f32 %v473, %v474
    %s476 = sld [smem:[#allocation2]]
    %v477 = vstv %s476
    %v478 = vadd.f32 %v475, %v477
    %vm479 = vcmask 57344
    %480 = vst.msk [vmem:[#allocation8] sm:$0x1] %vm479, %v478
    // Predicated region
    $region38: #{tpu_custom_call.1} parent=1 // pred_check
      _
    $region39: #{tpu_custom_call.1} parent=1 // pred_check_branch
      %482 = sbr.rel (0) target = $region41
    $region40: #{tpu_custom_call.1} parent=1 // pred_region
      %s484 = ssub.s32 16, 16
      %485 = vsyncadd [#allocation5], %s484
      %s487 = sshll.u32 [#allocation8], 4
      %s488 = int_to_ptr.vmem [resolvable:$true] %s487
      %490 = dma.vmem_to_hbm [thread:$0]  %s488, 16, %s7, [#allocation5]
    $region41: #{tpu_custom_call.1} parent=1 // pred_fallthru
      _
    // Predicated region
    $region42: #{tpu_custom_call.1} parent=1 // pred_check
      _
    $region43: #{tpu_custom_call.1} parent=1 // pred_check_branch
      %492 = sbr.rel (0) target = $region45
    $region44: #{tpu_custom_call.1} parent=1 // pred_region
      %493 = dma.done [#allocation5], 16
    $region45: #{tpu_custom_call.1} parent=1 // pred_fallthru
      _
    %494 = vsyncpa [#allocation4], 1
    %495 = vsyncpa [#allocation7], 1
    %496 = vsyncpa [#allocation5], 1

</llo_original>
